<compile_context>
chip_gen: v6e
topology: v6e:2x2x1
jax: 0.10.0
libtpu: 0.0.40
codegen_flags: <defaults>
</compile_context>

<pallas_src>
import functools

import jax
import jax.numpy as jnp
from jax.experimental import pallas as pl
from jax.experimental.pallas import tpu as pltpu


# ------------------------------ small helpers ------------------------------ #

def _round_up(x, m):
    return ((x + m - 1) // m) * m


def _vmem_limit_bytes(block_bytes):
    # generous headroom over the per-step working set, capped below v7x physical VMEM
    return int(min(64 * 1024 * 1024, max(16 * 1024 * 1024, 4 * block_bytes + (2 << 20))))


def _fold_bn(gamma, beta, mean, var, eps=1e-5):
    scale = gamma / jnp.sqrt(var + eps)
    bias = beta - mean * scale
    return scale, bias


# ----------------------------- Pallas kernels ------------------------------ #

def _mm_bn_single_kernel(x_ref, w_ref, s_ref, b_ref, o_ref, *, relu):
    """out = maybe_relu((x @ w) * scale + bias); single K block, no scratch."""
    acc = jnp.dot(x_ref[...], w_ref[...], preferred_element_type=jnp.float32)
    out = acc * s_ref[...] + b_ref[...]
    if relu:
        out = jnp.maximum(out, 0.0)
    o_ref[...] = out.astype(o_ref.dtype)


def _mm_bn_res_single_kernel(x_ref, w_ref, s_ref, b_ref, r_ref, o_ref):
    """out = relu((x @ w) * scale + bias + residual); single K block, no scratch."""
    acc = jnp.dot(x_ref[...], w_ref[...], preferred_element_type=jnp.float32)
    out = acc * s_ref[...] + b_ref[...] + r_ref[...].astype(jnp.float32)
    o_ref[...] = jnp.maximum(out, 0.0).astype(o_ref.dtype)


def _mm_bn_kernel(x_ref, w_ref, s_ref, b_ref, o_ref, acc_ref, *, relu):
    """out = maybe_relu((x @ w) * scale + bias); K reduced over grid axis 2."""
    @pl.when(pl.program_id(2) == 0)
    def _():
        acc_ref[...] = jnp.zeros_like(acc_ref)

    acc_ref[...] += jnp.dot(x_ref[...], w_ref[...],
                            preferred_element_type=jnp.float32)

    @pl.when(pl.program_id(2) == pl.num_programs(2) - 1)
    def _():
        out = acc_ref[...] * s_ref[...] + b_ref[...]
        if relu:
            out = jnp.maximum(out, 0.0)
        o_ref[...] = out.astype(o_ref.dtype)


def _mm_bn_res_kernel(x_ref, w_ref, s_ref, b_ref, r_ref, o_ref, acc_ref):
    """out = relu((x @ w) * scale + bias + residual); K reduced over grid axis 2."""
    @pl.when(pl.program_id(2) == 0)
    def _():
        acc_ref[...] = jnp.zeros_like(acc_ref)

    acc_ref[...] += jnp.dot(x_ref[...], w_ref[...],
                            preferred_element_type=jnp.float32)

    @pl.when(pl.program_id(2) == pl.num_programs(2) - 1)
    def _():
        out = acc_ref[...] * s_ref[...] + b_ref[...] + r_ref[...].astype(jnp.float32)
        o_ref[...] = jnp.maximum(out, 0.0).astype(o_ref.dtype)


def _conv3x3_bn_relu_kernel(x_ref, w_ref, s_ref, b_ref, o_ref, *, taps, hq, ho, wo):
    """Fused 3x3 conv (9 tap matmuls over static plane windows) + BN + ReLU.

    x_ref: (1, P*hq, wq, C) padded / parity-decomposed activation planes (bf16)
    w_ref: (9, C, F) per-tap weights (bf16); taps[t] = (plane, row_off, col_off)
    """
    c = x_ref.shape[-1]
    f = w_ref.shape[-1]
    acc = jnp.zeros((ho * wo, f), jnp.float32)
    for t, (plane, r0, c0) in enumerate(taps):          # static python loop (9 taps)
        r = plane * hq + r0
        win = x_ref[0, r:r + ho, c0:c0 + wo, :]          # (ho, wo, c), static slices
        acc = acc + jnp.dot(win.reshape(ho * wo, c), w_ref[t],
                            preferred_element_type=jnp.float32)
    out = acc * s_ref[...] + b_ref[...]
    out = jnp.maximum(out, 0.0)
    o_ref[0] = out.astype(o_ref.dtype)


# ------------------------------ kernel wrappers ----------------------------- #

def matmul_bn(x2d, w, scale, bias, *, residual=None, relu=True,
              out_dtype=jnp.bfloat16, tile_m=256, tile_n=256):
    """Fused (x2d @ w) * scale + bias [+ residual] [relu].

    bf16 operands, f32 accumulation, f32 epilogue.  Single-K-block case uses a
    scratch-free kernel on a 2-D grid; large K falls back to a 3-D grid with an
    f32 VMEM accumulator and an "arbitrary" reduction axis.
    """
    M, K = x2d.shape
    K2, N = w.shape
    assert K == K2

    x2d = x2d.astype(jnp.bfloat16)
    w = w.astype(jnp.bfloat16)
    s2 = scale.reshape(1, N).astype(jnp.float32)
    b2 = bias.reshape(1, N).astype(jnp.float32)
    if residual is not None:
        residual = residual.astype(jnp.bfloat16)

    tm = min(tile_m, _round_up(M, 8))
    tn = tile_n if (N > tile_n and N % 128 == 0) else N
    tk = K
    if K > 1024:                      # only tile K when it divides evenly
        for cand in (512, 256, 128):
            if K % cand == 0:
                tk = cand
                break
    nk = K // tk
    mb, nb = pl.cdiv(M, tm), pl.cdiv(N, tn)

    blk_bytes = 4 * (tm * tk + tk * tn + 2 * tn + 2 * tm * tn)
    if residual is not None:
        blk_bytes += 4 * tm * tn

    if nk == 1:
        # -------- single K block: no accumulator scratch, 2-D grid --------
        in_specs = [pl.BlockSpec((tm, tk), lambda i, j: (i, 0)),
                    pl.BlockSpec((tk, tn), lambda i, j: (0, j)),
                    pl.BlockSpec((1, tn), lambda i, j: (0, j)),
                    pl.BlockSpec((1, tn), lambda i, j: (0, j))]
        operands = [x2d, w, s2, b2]
        if residual is None:
            kern = functools.partial(_mm_bn_single_kernel, relu=relu)
        else:
            kern = _mm_bn_res_single_kernel
            operands.append(residual)
            in_specs.append(pl.BlockSpec((tm, tn), lambda i, j: (i, j)))
        o_spec = pl.BlockSpec((tm, tn), lambda i, j: (i, j))
        grid = (mb, nb)
        scratch = []
        semantics = ("parallel", "parallel")
    else:
        # -------- K-tiled reduction with f32 VMEM accumulator --------
        in_specs = [pl.BlockSpec((tm, tk), lambda i, j, k: (i, k)),
                    pl.BlockSpec((tk, tn), lambda i, j, k: (k, j)),
                    pl.BlockSpec((1, tn), lambda i, j, k: (0, j)),
                    pl.BlockSpec((1, tn), lambda i, j, k: (0, j))]
        operands = [x2d, w, s2, b2]
        if residual is None:
            kern = functools.partial(_mm_bn_kernel, relu=relu)
        else:
            kern = _mm_bn_res_kernel
            operands.append(residual)
            in_specs.append(pl.BlockSpec((tm, tn), lambda i, j, k: (i, j)))
        o_spec = pl.BlockSpec((tm, tn), lambda i, j, k: (i, j))
        grid = (mb, nb, nk)
        scratch = [pltpu.VMEM((tm, tn), jnp.float32)]
        semantics = ("parallel", "parallel", "arbitrary")

    return pl.pallas_call(
        kern,
        out_shape=jax.ShapeDtypeStruct((M, N), out_dtype),
        grid_spec=pltpu.PrefetchScalarGridSpec(
            num_scalar_prefetch=0,
            grid=grid,
            in_specs=in_specs,
            out_specs=o_spec,
            scratch_shapes=scratch,
        ),
        compiler_params=pltpu.CompilerParams(
            dimension_semantics=semantics,
            vmem_limit_bytes=_vmem_limit_bytes(blk_bytes),
        ),
    )(*operands)


def conv3x3_bn_relu(x_nhwc, w_9cf, scale, bias, stride):
    """3x3 conv (padding=1, given stride) + BN + ReLU, fused; no materialized im2col.

    For stride 2 the padded activation is decomposed into 4 spatial-parity planes so
    every tap becomes a static contiguous window read inside the kernel.
    Returns the output flattened to (N*Ho*Wo, Cout) as bf16, plus (Ho, Wo).
    """
    n, h, w, c = x_nhwc.shape
    ho = (h + 2 - 3) // stride + 1
    wo = (w + 2 - 3) // stride + 1
    f = w_9cf.shape[-1]
    x_nhwc = x_nhwc.astype(jnp.bfloat16)
    w_9cf = w_9cf.astype(jnp.bfloat16)

    if stride == 1:
        p, hq, wq = 1, h + 2, w + 2
        planes = jnp.pad(x_nhwc, ((0, 0), (1, 1), (1, 1), (0, 0)))[:, None]
        taps = tuple((0, kh, kw) for kh in range(3) for kw in range(3))
    elif stride == 2:
        p, hq, wq = 4, ho + 1, wo + 1
        xp = jnp.pad(x_nhwc, ((0, 0), (1, 2), (1, 2), (0, 0)))
        planes = jnp.stack([xp[:, a::2, b::2, :][:, :hq, :wq, :]
                            for a in (0, 1) for b in (0, 1)], axis=1)
        taps = tuple(((kh % 2) * 2 + (kw % 2), kh // 2, kw // 2)
                     for kh in range(3) for kw in range(3))
    else:
        raise NotImplementedError(stride)
    planes = planes.reshape(n, p * hq, wq, c)

    s2 = scale.reshape(1, f).astype(jnp.float32)
    b2 = bias.reshape(1, f).astype(jnp.float32)

    kern = functools.partial(_conv3x3_bn_relu_kernel, taps=taps, hq=hq, ho=ho, wo=wo)
    blk_bytes = 4 * (p * hq * wq * c + 9 * c * f + 2 * f + 2 * ho * wo * f)
    out = pl.pallas_call(
        kern,
        out_shape=jax.ShapeDtypeStruct((n, ho * wo, f), jnp.bfloat16),
        grid_spec=pltpu.PrefetchScalarGridSpec(
            num_scalar_prefetch=0,
            grid=(n,),
            in_specs=[pl.BlockSpec((1, p * hq, wq, c), lambda i: (i, 0, 0, 0)),
                      pl.BlockSpec((9, c, f), lambda i: (0, 0, 0)),
                      pl.BlockSpec((1, f), lambda i: (0, 0)),
                      pl.BlockSpec((1, f), lambda i: (0, 0))],
            out_specs=pl.BlockSpec((1, ho * wo, f), lambda i: (i, 0, 0)),
        ),
        compiler_params=pltpu.CompilerParams(
            dimension_semantics=("parallel",),
            vmem_limit_bytes=_vmem_limit_bytes(blk_bytes),
        ),
    )(planes, w_9cf, s2, b2)
    return out.reshape(n * ho * wo, f), ho, wo


# ------------------------------- Block module ------------------------------ #

def init_block_params(key, f_in, f_out, downsample):
    expansion = 4
    stride = 2 if downsample else 1
    cb = int(4 * round(f_out * expansion / 4))
    keys = jax.random.split(key, 4)
    p = {}
    # conv weights, PyTorch layout (Cout, Cin, kh, kw)
    p["w1"] = 0.1 * jax.random.normal(keys[0], (f_out, f_in, 1, 1), jnp.float32)
    p["w2"] = 0.1 * jax.random.normal(keys[1], (f_out, f_out, 3, 3), jnp.float32)
    p["w3"] = 0.1 * jax.random.normal(keys[2], (cb, f_out, 1, 1), jnp.float32)

    def bn(c, g0, b0, m0, v0):
        return (jnp.full((c,), g0, jnp.float32), jnp.full((c,), b0, jnp.float32),
                jnp.full((c,), m0, jnp.float32), jnp.full((c,), v0, jnp.float32))

    p["bn1"] = bn(f_out, 1.0, 0.05, 0.02, 1.1)
    p["bn2"] = bn(f_out, 0.9, -0.03, -0.01, 0.95)
    p["bn3"] = bn(cb, 1.05, 0.02, 0.03, 1.2)

    p["has_shortcut"] = bool(downsample or f_in != cb)
    if p["has_shortcut"]:
        p["wsc"] = 0.1 * jax.random.normal(keys[3], (cb, f_in, 1, 1), jnp.float32)
        p["bnsc"] = bn(cb, 0.95, 0.01, 0.0, 1.0)
    p["stride"] = stride
    p["cb"] = cb
    p["f_out"] = f_out
    return p


def prepare_block_params(params):
    """One-time prep: weights in (K, N) matmul layout (bf16), BN folded to f32 scale/bias."""
    bf = jnp.bfloat16
    f_out, cb = params["f_out"], params["cb"]
    c_in = params["w1"].shape[1]
    prep = {"stride": params["stride"], "cb": cb, "f_out": f_out,
            "has_shortcut": params["has_shortcut"]}
    prep["w1"] = params["w1"].reshape(f_out, c_in).T.astype(bf)                 # (Cin, f_out)
    prep["s1"], prep["b1"] = _fold_bn(*params["bn1"])
    prep["w2"] = jnp.transpose(params["w2"], (2, 3, 1, 0)).reshape(9, f_out, f_out).astype(bf)
    prep["s2"], prep["b2"] = _fold_bn(*params["bn2"])
    prep["w3"] = params["w3"].reshape(cb, f_out).T.astype(bf)                   # (f_out, cb)
    prep["s3"], prep["b3"] = _fold_bn(*params["bn3"])
    if params["has_shortcut"]:
        prep["wsc"] = params["wsc"].reshape(cb, c_in).T.astype(bf)              # (Cin, cb)
        prep["ssc"], prep["bsc"] = _fold_bn(*params["bnsc"])
    return prep


def block_forward(prep, x_nchw):
    """ResNet bottleneck Block forward (inference). I/O is NCHW (PyTorch convention)."""
    stride, f_out, cb = prep["stride"], prep["f_out"], prep["cb"]

    x = jnp.transpose(x_nchw, (0, 2, 3, 1))           # -> NHWC
    n, h, w, c_in = x.shape
    x_bf = x.astype(jnp.bfloat16)

    # ---- shortcut branch (1x1 conv stride s == strided sample + matmul) ----
    if prep["has_shortcut"]:
        xs2d = x_bf[:, ::stride, ::stride, :].reshape(-1, c_in)
        shortcut = matmul_bn(xs2d, prep["wsc"], prep["ssc"], prep["bsc"],
                             relu=False, out_dtype=jnp.bfloat16)
    else:
        # identity path: stride == 1 and c_in == cb guaranteed by construction
        shortcut = x_bf.reshape(-1, c_in)

    # ---- conv1 (1x1) + bn1 + relu ----
    y1 = matmul_bn(x_bf.reshape(-1, c_in), prep["w1"], prep["s1"], prep["b1"],
                   relu=True, out_dtype=jnp.bfloat16)
    y1 = y1.reshape(n, h, w, f_out)

    # ---- conv2 (3x3, stride, pad=1) + bn2 + relu (fused taps, no im2col) ----
    y2, ho, wo = conv3x3_bn_relu(y1, prep["w2"], prep["s2"], prep["b2"], stride)

    # ---- conv3 (1x1) + bn3 + residual add + relu (fused epilogue) ----
    out = matmul_bn(y2, prep["w3"], prep["s3"], prep["b3"],
                    residual=shortcut, relu=True, out_dtype=jnp.float32)

    out = out.reshape(n, ho, wo, cb)
    return jnp.transpose(out, (0, 3, 1, 2))           # -> NCHW


# ------------------------------ pure-JAX references ------------------------- #

def _ref_forward(params, x_nchw, *, bf16):
    """XLA reference. bf16=True mirrors the kernel's bf16 operands / f32 accumulation /
    bf16 intermediates for a tight comparison; bf16=False is the full-f32 reference."""
    cast = (lambda a: a.astype(jnp.bfloat16)) if bf16 else (lambda a: a)

    def conv(x, w, stride, pad):
        return jax.lax.conv_general_dilated(
            cast(x), cast(w), window_strides=(stride, stride),
            padding=[(pad, pad), (pad, pad)],
            dimension_numbers=("NCHW", "OIHW", "NCHW"),
            preferred_element_type=jnp.float32)

    def bn(y, prm):
        s, b = _fold_bn(*prm)
        return y * s[None, :, None, None] + b[None, :, None, None]

    st = params["stride"]
    out = cast(jax.nn.relu(bn(conv(x_nchw, params["w1"], 1, 0), params["bn1"])))
    out = cast(jax.nn.relu(bn(conv(out, params["w2"], st, 1), params["bn2"])))
    out = bn(conv(out, params["w3"], 1, 0), params["bn3"])
    if params["has_shortcut"]:
        sc = cast(bn(conv(x_nchw, params["wsc"], st, 0), params["bnsc"]))
    else:
        sc = cast(x_nchw)
    return jax.nn.relu(out + sc.astype(jnp.float32))


# ---------------------------------- main ------------------------------------ #

if __name__ == "__main__":
    key = jax.random.PRNGKey(0)
    k_x, k_p = jax.random.split(key)

    # small shapes: N=2, f_in=16, H=W=16, f_out=8, downsample=True -> cb=32, 8x8 output
    f_in, f_out, downsample = 16, 8, True
    x = jax.random.normal(k_x, (2, f_in, 16, 16), jnp.float32)   # NCHW, like PyTorch

    params = init_block_params(k_p, f_in, f_out, downsample)
    prep = prepare_block_params(params)          # one-time layout / BN-folding prep

    y = jax.block_until_ready(block_forward(prep, x))
    assert y.shape == (2, params["cb"], 8, 8), y.shape
    assert y.dtype == jnp.float32, y.dtype

    # tight check vs. a bf16-matched XLA reference (same casts as the kernels)
    y_ref = jax.block_until_ready(_ref_forward(params, x, bf16=True))
    err = float(jnp.max(jnp.abs(y - y_ref)))
    assert jnp.allclose(y, y_ref, atol=1e-2, rtol=1e-2), err

    # loose sanity check vs. the full-f32 reference (bounds the bf16 quantization error)
    y_f32 = jax.block_until_ready(_ref_forward(params, x, bf16=False))
    err32 = float(jnp.max(jnp.abs(y - y_f32)))
    assert jnp.allclose(y, y_f32, atol=1e-1, rtol=1e-1), err32

    print("KERNEL_OK")
</pallas_src>

<mosaic_0001>
module attributes {stable_mosaic.version = 11 : i64} {
  func.func @_mm_bn_single_kernel(%arg0: i32, %arg1: i32, %arg2: memref<128x16xbf16, #tpu.memory_space<vmem>>, %arg3: memref<16x32xbf16, #tpu.memory_space<vmem>>, %arg4: memref<1x32xf32, #tpu.memory_space<vmem>>, %arg5: memref<1x32xf32, #tpu.memory_space<vmem>>, %arg6: memref<128x32xbf16, #tpu.memory_space<vmem>>) attributes {dimension_semantics = [#tpu.dimension_semantics<parallel>, #tpu.dimension_semantics<parallel>], iteration_bounds = array<i64: 1, 1>, scalar_prefetch = 0 : i64, scratch_operands = 0 : i64, tpu.core_type = #tpu.core_type<tc>, window_params = [{transform_indices = @transform_0, window_bounds = array<i64: 128, 16>}, {transform_indices = @transform_1, window_bounds = array<i64: 16, 32>}, {transform_indices = @transform_2, window_bounds = array<i64: 1, 32>}, {transform_indices = @transform_3, window_bounds = array<i64: 1, 32>}, {transform_indices = @transform_4, window_bounds = array<i64: 128, 32>}]} {
    %c0 = arith.constant 0 : index
    %c0_0 = arith.constant 0 : index
    %0 = vector.load %arg2[%c0, %c0_0] : memref<128x16xbf16, #tpu.memory_space<vmem>>, vector<128x16xbf16>
    %c0_1 = arith.constant 0 : index
    %c0_2 = arith.constant 0 : index
    %1 = vector.load %arg3[%c0_1, %c0_2] : memref<16x32xbf16, #tpu.memory_space<vmem>>, vector<16x32xbf16>
    %cst = arith.constant dense<0.000000e+00> : vector<128x32xf32>
    %2 = tpu.matmul %0, %1, %cst {dimension_numbers = #tpu.dot_dimension_numbers<[1], [0], [0], [1], [0, 0, 1, 1], [], []>} : vector<128x16xbf16>, vector<16x32xbf16>, vector<128x32xf32> -> vector<128x32xf32>
    %c0_3 = arith.constant 0 : index
    %c0_4 = arith.constant 0 : index
    %3 = vector.load %arg4[%c0_3, %c0_4] : memref<1x32xf32, #tpu.memory_space<vmem>>, vector<1x32xf32>
    %4 = vector.broadcast %3 : vector<1x32xf32> to vector<128x32xf32>
    %5 = arith.mulf %2, %4 : vector<128x32xf32>
    %c0_5 = arith.constant 0 : index
    %c0_6 = arith.constant 0 : index
    %6 = vector.load %arg5[%c0_5, %c0_6] : memref<1x32xf32, #tpu.memory_space<vmem>>, vector<1x32xf32>
    %7 = vector.broadcast %6 : vector<1x32xf32> to vector<128x32xf32>
    %8 = arith.addf %5, %7 : vector<128x32xf32>
    %9 = arith.truncf %8 : vector<128x32xf32> to vector<128x32xbf16>
    %c0_7 = arith.constant 0 : index
    %c0_8 = arith.constant 0 : index
    %10 = vector.load %arg6[%c0_7, %c0_8] : memref<128x32xbf16, #tpu.memory_space<vmem>>, vector<128x32xbf16>
    tpu.vector_store %arg6[%c0_7, %c0_8], %9 {strides = array<i32>} : memref<128x32xbf16, #tpu.memory_space<vmem>>, vector<128x32xbf16>,
    return
  }
  func.func @transform_0(%arg0: i32, %arg1: i32) -> (i32, i32) {
    %c0_i32 = arith.constant 0 : i32
    %c0_i32_0 = arith.constant 0 : i32
    return %arg0, %c0_i32 : i32, i32
  }
  func.func @transform_1(%arg0: i32, %arg1: i32) -> (i32, i32) {
    %c0_i32 = arith.constant 0 : i32
    %c0_i32_0 = arith.constant 0 : i32
    return %c0_i32, %arg1 : i32, i32
  }
  func.func @transform_2(%arg0: i32, %arg1: i32) -> (i32, i32) {
    %c0_i32 = arith.constant 0 : i32
    %c0_i32_0 = arith.constant 0 : i32
    return %c0_i32, %arg1 : i32, i32
  }
  func.func @transform_3(%arg0: i32, %arg1: i32) -> (i32, i32) {
    %c0_i32 = arith.constant 0 : i32
    %c0_i32_0 = arith.constant 0 : i32
    return %c0_i32, %arg1 : i32, i32
  }
  func.func @transform_4(%arg0: i32, %arg1: i32) -> (i32, i32) {
    %c0_i32 = arith.constant 0 : i32
    return %arg0, %arg1 : i32, i32
  }
}

</mosaic_0001>

<llo_original>
// kernel: tpu_custom_call.1
$region0: #{tpu_custom_call.1}
  #allocation0 [shape = 'u32[]', space=smem, size = 0x4, offset = 0x4, fixed_abs, tag = 'smem constant byte address 0x4 - core index']
  #allocation1 [shape = 'u32[144,128]{1,0:T(1,128)}', space=vmem, size = 0x12000, scoped, tag = 'internal scratch']
  %s0 = inlined_call_operand.vmem [shape: bf16[128,16], index: 0, kind: input, shape index: {}]
  %s1 = inlined_call_operand.vmem [shape: bf16[16,32], index: 1, kind: input, shape index: {}]
  %s2 = inlined_call_operand.vmem [shape: f32[1,32], index: 2, kind: input, shape index: {}]
  %s3 = inlined_call_operand.vmem [shape: f32[1,32], index: 3, kind: input, shape index: {}]
  %s4 = inlined_call_operand.vmem [shape: bf16[128,32], index: 4, kind: output, shape index: {}]
  %s5 = sld [smem:[#allocation0]]
  $region26: #{tpu_custom_call.1} parent=0
    _
  %s7 = ssub.s32 1, %s5
  %s8 = scalar_select 0, %s7, %s5
  // Predicated region
  $region2: #{tpu_custom_call.1} parent=0 // pred_check
    _
  $region3: #{tpu_custom_call.1} parent=0 // pred_check_branch
    %10 = sbr.rel (0) target = $region5
  $region4: #{tpu_custom_call.1} parent=0 // pred_region
    _
  $region5: #{tpu_custom_call.1} parent=0 // pred_fallthru
    _
  // Predicated region
  $region6: #{tpu_custom_call.1} parent=0 // pred_check
    _
  $region7: #{tpu_custom_call.1} parent=0 // pred_check_branch
    %12 = sbr.rel (0) target = $region9
  $region8: #{tpu_custom_call.1} parent=0 // pred_region
    _
  $region9: #{tpu_custom_call.1} parent=0 // pred_fallthru
    _
  // Predicated region
  $region10: #{tpu_custom_call.1} parent=0 // pred_check
    _
  $region11: #{tpu_custom_call.1} parent=0 // pred_check_branch
    %14 = sbr.rel (0) target = $region13
  $region12: #{tpu_custom_call.1} parent=0 // pred_region
    _
  $region13: #{tpu_custom_call.1} parent=0 // pred_fallthru
    _
  // Predicated region
  $region14: #{tpu_custom_call.1} parent=0 // pred_check
    _
  $region15: #{tpu_custom_call.1} parent=0 // pred_check_branch
    %16 = sbr.rel (0) target = $region17
  $region16: #{tpu_custom_call.1} parent=0 // pred_region
    _
  $region17: #{tpu_custom_call.1} parent=0 // pred_fallthru
    _
  %v18 = vld [vmem:[%s0] sm:$0xf]
  %v19 = vld [vmem:[%s0 + $0x4] sm:$0xf]
  %v20 = vld [vmem:[%s0 + $0x8] sm:$0xf]
  %v21 = vld [vmem:[%s0 + $0xc] sm:$0xf]
  %v22 = vld [vmem:[%s0 + $0x10] sm:$0xf]
  %v23 = vld [vmem:[%s0 + $0x14] sm:$0xf]
  %v24 = vld [vmem:[%s0 + $0x18] sm:$0xf]
  %v25 = vld [vmem:[%s0 + $0x1c] sm:$0xf]
  %v26 = vld [vmem:[%s0 + $0x20] sm:$0xf]
  %v27 = vld [vmem:[%s0 + $0x24] sm:$0xf]
  %v28 = vld [vmem:[%s0 + $0x28] sm:$0xf]
  %v29 = vld [vmem:[%s0 + $0x2c] sm:$0xf]
  %v30 = vld [vmem:[%s0 + $0x30] sm:$0xf]
  %v31 = vld [vmem:[%s0 + $0x34] sm:$0xf]
  %v32 = vld [vmem:[%s0 + $0x38] sm:$0xf]
  %v33 = vld [vmem:[%s0 + $0x3c] sm:$0xf]
  %v34 = vld [vmem:[%s1] sm:$0xf]
  %v35 = vld [vmem:[%s1 + $0x4] sm:$0xf]
  %v52 = vunpack.c.l.b16 %v18
  %v53 = vunpack.c.l.b16 %v19
  %v54 = vunpack.c.l.b16 %v20
  %v55 = vunpack.c.l.b16 %v21
  %v56 = vunpack.c.l.b16 %v22
  %v57 = vunpack.c.l.b16 %v23
  %v58 = vunpack.c.l.b16 %v24
  %v59 = vunpack.c.l.b16 %v25
  %v60 = vunpack.c.l.b16 %v26
  %v61 = vunpack.c.l.b16 %v27
  %v62 = vunpack.c.l.b16 %v28
  %v63 = vunpack.c.l.b16 %v29
  %v64 = vunpack.c.l.b16 %v30
  %v65 = vunpack.c.l.b16 %v31
  %v66 = vunpack.c.l.b16 %v32
  %v67 = vunpack.c.l.b16 %v33
  %v68 = vpack.c.b16 %v53, %v52
  %v69 = vpack.c.b16 %v55, %v54
  %v70 = vpack.c.b16 %v57, %v56
  %v71 = vpack.c.b16 %v59, %v58
  %v72 = vpack.c.b16 %v61, %v60
  %v73 = vpack.c.b16 %v63, %v62
  %v74 = vpack.c.b16 %v65, %v64
  %v75 = vpack.c.b16 %v67, %v66
  %v78 = vunpack.c.l.b16 %v34
  %v79 = vunpack.c.l.b16 %v35
  %v80 = vpack.c.b16 %v79, %v78
  %vm82 = vcmask 130048
  %v84 = vsel %vm82, %v68, 0
  %v87 = vsel %vm82, %v69, 0
  %v90 = vsel %vm82, %v70, 0
  %v93 = vsel %vm82, %v71, 0
  %v96 = vsel %vm82, %v72, 0
  %v99 = vsel %vm82, %v73, 0
  %v102 = vsel %vm82, %v74, 0
  %v105 = vsel %vm82, %v75, 0
  %107 = vmatprep.subr.bf16.mxu0 0
  %108 = vmatpush1.bf16.msra.mxu0 0
  %109 = vmatprep.subr.bf16.mxu0 0
  %110 = vmatpush1.bf16.msra.mxu0 0
  %111 = vmatprep.subr.bf16.mxu0 0
  %112 = vmatpush1.bf16.msra.mxu0 0
  %113 = vmatprep.subr.bf16.mxu0 0
  %114 = vmatpush1.bf16.msra.mxu0 0
  %115 = vmatprep.subr.bf16.mxu0 0
  %116 = vmatpush1.bf16.msra.mxu0 0
  %117 = vmatprep.subr.bf16.mxu0 0
  %118 = vmatpush1.bf16.msra.mxu0 0
  %119 = vmatprep.subr.bf16.mxu0 0
  %120 = vmatpush1.bf16.msra.mxu0 0
  %121 = vmatprep.subr.bf16.mxu0 0
  %122 = vmatpush1.bf16.msra.mxu0 %v80
  %123 = vmatprep.subr.bf16.mxu0 0
  %124 = vmatpush2.bf16.msra.mxu0 0
  %125 = vmatprep.subr.bf16.mxu0 0
  %126 = vmatpush2.bf16.msra.mxu0 0
  %127 = vmatprep.subr.bf16.mxu0 0
  %128 = vmatpush2.bf16.msra.mxu0 0
  %129 = vmatprep.subr.bf16.mxu0 0
  %130 = vmatpush2.bf16.msra.mxu0 0
  %131 = vmatprep.subr.bf16.mxu0 0
  %132 = vmatpush2.bf16.msra.mxu0 0
  %133 = vmatprep.subr.bf16.mxu0 0
  %134 = vmatpush2.bf16.msra.mxu0 0
  %135 = vmatprep.subr.bf16.mxu0 0
  %136 = vmatpush2.bf16.msra.mxu0 0
  %137 = vmatprep.subr.bf16.mxu0 0
  %138 = vmatpush2.bf16.msra.mxu0 0
  %139 = vmatprep.mubr.bf16.mxu0 0
  %140 = vmatmul.mubr.bf16.gmra.mxu0 %v84
  %v141 = vpop.f32.mrf.mxu0
  %v142 = vadd.f32 0.0, %v141
  %v143 = vpop.f32.mrf.mxu0
  %v144 = vpop.f32.mrf.mxu0
  %v145 = vadd.f32 0.0, %v144
  %v146 = vpop.f32.mrf.mxu0
  %147 = vmatprep.mubr.bf16.mxu0 0
  %148 = vmatmul.mubr.bf16.gmra.mxu0 %v87
  %v149 = vpop.f32.mrf.mxu0
  %v150 = vadd.f32 0.0, %v149
  %v151 = vpop.f32.mrf.mxu0
  %v152 = vpop.f32.mrf.mxu0
  %v153 = vadd.f32 0.0, %v152
  %v154 = vpop.f32.mrf.mxu0
  %155 = vmatprep.mubr.bf16.mxu0 0
  %156 = vmatmul.mubr.bf16.gmra.mxu0 %v90
  %v157 = vpop.f32.mrf.mxu0
  %v158 = vadd.f32 0.0, %v157
  %v159 = vpop.f32.mrf.mxu0
  %v160 = vpop.f32.mrf.mxu0
  %v161 = vadd.f32 0.0, %v160
  %v162 = vpop.f32.mrf.mxu0
  %163 = vmatprep.mubr.bf16.mxu0 0
  %164 = vmatmul.mubr.bf16.gmra.mxu0 %v93
  %v165 = vpop.f32.mrf.mxu0
  %v166 = vadd.f32 0.0, %v165
  %v167 = vpop.f32.mrf.mxu0
  %v168 = vpop.f32.mrf.mxu0
  %v169 = vadd.f32 0.0, %v168
  %v170 = vpop.f32.mrf.mxu0
  %171 = vmatprep.mubr.bf16.mxu0 0
  %172 = vmatmul.mubr.bf16.gmra.mxu0 %v96
  %v173 = vpop.f32.mrf.mxu0
  %v174 = vadd.f32 0.0, %v173
  %v175 = vpop.f32.mrf.mxu0
  %v176 = vpop.f32.mrf.mxu0
  %v177 = vadd.f32 0.0, %v176
  %v178 = vpop.f32.mrf.mxu0
  %179 = vmatprep.mubr.bf16.mxu0 0
  %180 = vmatmul.mubr.bf16.gmra.mxu0 %v99
  %v181 = vpop.f32.mrf.mxu0
  %v182 = vadd.f32 0.0, %v181
  %v183 = vpop.f32.mrf.mxu0
  %v184 = vpop.f32.mrf.mxu0
  %v185 = vadd.f32 0.0, %v184
  %v186 = vpop.f32.mrf.mxu0
  %187 = vmatprep.mubr.bf16.mxu0 0
  %188 = vmatmul.mubr.bf16.gmra.mxu0 %v102
  %v189 = vpop.f32.mrf.mxu0
  %v190 = vadd.f32 0.0, %v189
  %v191 = vpop.f32.mrf.mxu0
  %v192 = vpop.f32.mrf.mxu0
  %v193 = vadd.f32 0.0, %v192
  %v194 = vpop.f32.mrf.mxu0
  %195 = vmatprep.mubr.bf16.mxu0 0
  %196 = vmatmul.mubr.bf16.gmra.mxu0 %v105
  %v197 = vpop.f32.mrf.mxu0
  %v198 = vadd.f32 0.0, %v197
  %v199 = vpop.f32.mrf.mxu0
  %v200 = vpop.f32.mrf.mxu0
  %v201 = vadd.f32 0.0, %v200
  %v202 = vpop.f32.mrf.mxu0
  %203 = vdwg.mxu0
  %v204 = vld [vmem:[%s2] sm:$0x1]
  %v206 = vlaneseq
  %v207 = vshrl.u32 %v206, 7
  %v208 = vsub.s32 0, %v207
  %v209 = vrot.slane %v204, %v208
  %v211 = vmul.f32 %v142, %v209
  %v212 = vmul.f32 %v145, %v209
  %v213 = vmul.f32 %v150, %v209
  %v214 = vmul.f32 %v153, %v209
  %v215 = vmul.f32 %v158, %v209
  %v216 = vmul.f32 %v161, %v209
  %v217 = vmul.f32 %v166, %v209
  %v218 = vmul.f32 %v169, %v209
  %v219 = vmul.f32 %v174, %v209
  %v220 = vmul.f32 %v177, %v209
  %v221 = vmul.f32 %v182, %v209
  %v222 = vmul.f32 %v185, %v209
  %v223 = vmul.f32 %v190, %v209
  %v224 = vmul.f32 %v193, %v209
  %v225 = vmul.f32 %v198, %v209
  %v226 = vmul.f32 %v201, %v209
  %v227 = vld [vmem:[%s3] sm:$0x1]
  %v229 = vlaneseq
  %v230 = vshrl.u32 %v229, 7
  %v231 = vsub.s32 0, %v230
  %v232 = vrot.slane %v227, %v231
  %v234 = vadd.f32 %v211, %v232
  %v235 = vadd.f32 %v212, %v232
  %v236 = vadd.f32 %v213, %v232
  %v237 = vadd.f32 %v214, %v232
  %v238 = vadd.f32 %v215, %v232
  %v239 = vadd.f32 %v216, %v232
  %v240 = vadd.f32 %v217, %v232
  %v241 = vadd.f32 %v218, %v232
  %v242 = vadd.f32 %v219, %v232
  %v243 = vadd.f32 %v220, %v232
  %v244 = vadd.f32 %v221, %v232
  %v245 = vadd.f32 %v222, %v232
  %v246 = vadd.f32 %v223, %v232
  %v247 = vadd.f32 %v224, %v232
  %v248 = vadd.f32 %v225, %v232
  %v249 = vadd.f32 %v226, %v232
  %v250 = vpack.c.bf16 %v235, %v234
  %v251 = vpack.c.bf16 %v237, %v236
  %v252 = vpack.c.bf16 %v239, %v238
  %v253 = vpack.c.bf16 %v241, %v240
  %v254 = vpack.c.bf16 %v243, %v242
  %v255 = vpack.c.bf16 %v245, %v244
  %v256 = vpack.c.bf16 %v247, %v246
  %v257 = vpack.c.bf16 %v249, %v248
  %v266 = vunpack.c.l.b16 %v250
  %v267 = vunpack.c.h.b16 %v250
  %v268 = vunpack.c.l.b16 %v251
  %v269 = vunpack.c.h.b16 %v251
  %v270 = vunpack.c.l.b16 %v252
  %v271 = vunpack.c.h.b16 %v252
  %v272 = vunpack.c.l.b16 %v253
  %v273 = vunpack.c.h.b16 %v253
  %v274 = vunpack.c.l.b16 %v254
  %v275 = vunpack.c.h.b16 %v254
  %v276 = vunpack.c.l.b16 %v255
  %v277 = vunpack.c.h.b16 %v255
  %v278 = vunpack.c.l.b16 %v256
  %v279 = vunpack.c.h.b16 %v256
  %v280 = vunpack.c.l.b16 %v257
  %v281 = vunpack.c.h.b16 %v257
  %v282 = vpack.c.b16 %v266, %v266
  %v283 = vpack.c.b16 %v267, %v267
  %v284 = vpack.c.b16 %v268, %v268
  %v285 = vpack.c.b16 %v269, %v269
  %v286 = vpack.c.b16 %v270, %v270
  %v287 = vpack.c.b16 %v271, %v271
  %v288 = vpack.c.b16 %v272, %v272
  %v289 = vpack.c.b16 %v273, %v273
  %v290 = vpack.c.b16 %v274, %v274
  %v291 = vpack.c.b16 %v275, %v275
  %v292 = vpack.c.b16 %v276, %v276
  %v293 = vpack.c.b16 %v277, %v277
  %v294 = vpack.c.b16 %v278, %v278
  %v295 = vpack.c.b16 %v279, %v279
  %v296 = vpack.c.b16 %v280, %v280
  %v297 = vpack.c.b16 %v281, %v281
  %vm314 = vcmask 257024
  %315 = vst.msk [vmem:[%s4] sm:$0xf] %vm314, %v282
  %316 = vst.msk [vmem:[%s4 + $0x4] sm:$0xf] %vm314, %v283
  %317 = vst.msk [vmem:[%s4 + $0x8] sm:$0xf] %vm314, %v284
  %318 = vst.msk [vmem:[%s4 + $0xc] sm:$0xf] %vm314, %v285
  %319 = vst.msk [vmem:[%s4 + $0x10] sm:$0xf] %vm314, %v286
  %320 = vst.msk [vmem:[%s4 + $0x14] sm:$0xf] %vm314, %v287
  %321 = vst.msk [vmem:[%s4 + $0x18] sm:$0xf] %vm314, %v288
  %322 = vst.msk [vmem:[%s4 + $0x1c] sm:$0xf] %vm314, %v289
  %323 = vst.msk [vmem:[%s4 + $0x20] sm:$0xf] %vm314, %v290
  %324 = vst.msk [vmem:[%s4 + $0x24] sm:$0xf] %vm314, %v291
  %325 = vst.msk [vmem:[%s4 + $0x28] sm:$0xf] %vm314, %v292
  %326 = vst.msk [vmem:[%s4 + $0x2c] sm:$0xf] %vm314, %v293
  %327 = vst.msk [vmem:[%s4 + $0x30] sm:$0xf] %vm314, %v294
  %328 = vst.msk [vmem:[%s4 + $0x34] sm:$0xf] %vm314, %v295
  %329 = vst.msk [vmem:[%s4 + $0x38] sm:$0xf] %vm314, %v296
  %330 = vst.msk [vmem:[%s4 + $0x3c] sm:$0xf] %vm314, %v297
  // Predicated region
  $region18: #{tpu_custom_call.1} parent=0 // pred_check
    _
  $region19: #{tpu_custom_call.1} parent=0 // pred_check_branch
    %332 = sbr.rel (0) target = $region21
  $region20: #{tpu_custom_call.1} parent=0 // pred_region
    _
  $region21: #{tpu_custom_call.1} parent=0 // pred_fallthru
    _
  // Predicated region
  $region22: #{tpu_custom_call.1} parent=0 // pred_check
    _
  $region23: #{tpu_custom_call.1} parent=0 // pred_check_branch
    %334 = sbr.rel (0) target = $region25
  $region24: #{tpu_custom_call.1} parent=0 // pred_region
    _
  $region25: #{tpu_custom_call.1} parent=0 // pred_fallthru
    _

</llo_original>
